<compile_context>
chip_gen: v7x
topology: tpu7x:2x2x1
jax: 0.10.0
libtpu: 0.0.40
codegen_flags: <defaults>
</compile_context>

<pallas_src>
import jax
import jax.numpy as jnp
from jax.experimental import pallas as pl
from jax.experimental.pallas import tpu as pltpu


def _per_label_word_attn_kernel(x_ref, w_ref, b_ref, cv_ref, emat_ref, tmat_ref, o_ref):
    # x_ref   : (G*SL, I)    G fused (batch, sentence) slabs; one row per word
    # w_ref   : (I, O)       linear weight, pre-transposed (x @ w == Linear(x) - bias)
    # b_ref   : (1, O)       linear bias
    # cv_ref  : (O, NC)      per-class context vectors, pre-transposed
    # emat_ref: (NC, NC*O)   emat[c, c*O + o] = 1   (repeats each attention weight O times)
    # tmat_ref: (I,  NC*O)   tmat[i, c*O + i] = 1   (tiles the input row NC times)
    # o_ref   : (G,  NC*O)   lane-dense output rows; o_ref[g, c*O + o] = output[g, c, o]
    gsl, _ = x_ref.shape
    nc = cv_ref.shape[1]
    g = o_ref.shape[0]
    sl = gsl // g
    nco = o_ref.shape[1]

    x = x_ref[...].astype(jnp.float32)                                        # (G*SL, I)

    # hidden = tanh(Linear(x)) for all G*SL words in one MXU call.
    h = jnp.tanh(
        jnp.dot(x, w_ref[...], preferred_element_type=jnp.float32) + b_ref[...]
    )                                                                         # (G*SL, O)

    # attention logits against the per-class context vectors (no in-kernel transpose).
    logits = jnp.dot(h, cv_ref[...], preferred_element_type=jnp.float32)      # (G*SL, NC)

    # per-sentence max over the word dim (torch dim=-2), then softmax over classes.
    # (reshapes below only split/merge sublane-aligned leading dims -> layout-free)
    lg = logits.reshape(g, sl, nc)
    lmax = jnp.max(lg, axis=1, keepdims=True)                                 # (G, 1, NC)
    shifted = lg - lmax
    m = jnp.max(shifted, axis=-1, keepdims=True)
    e = jnp.exp(shifted - m)
    att = e * pl.reciprocal(jnp.sum(e, axis=-1, keepdims=True), approx=False)  # (G, SL, NC)
    att2 = att.reshape(gsl, nc)                                               # (G*SL, NC)

    # Lane-dense weighted sum of the ORIGINAL input:
    #   out[g, c*O + o] = sum_t att[g, t, c] * x[g, t, o]
    # The constant 0/1 expansion matmuls keep every downstream intermediate NC*O lanes
    # wide, avoiding both a minor-dim reshape and G tiny (SLxNCxO) MXU calls.
    att_wide = jnp.dot(att2, emat_ref[...], preferred_element_type=jnp.float32)  # (G*SL, NC*O)
    x_wide = jnp.dot(x, tmat_ref[...], preferred_element_type=jnp.float32)       # (G*SL, NC*O)
    prod = att_wide * x_wide                                                      # VPU
    out = jnp.sum(prod.reshape(g, sl, nco), axis=1)                               # (G, NC*O)
    o_ref[...] = out.astype(o_ref.dtype)


def _pick_group_size(total, sentence_length, input_size, nc_times_o,
                     target=128, vmem_budget_bytes=8 * 1024 * 1024):
    """Choose how many (batch, sentence) slabs to fuse per grid step.

    G must divide `total`, be a multiple of 8 (sublane-aligned leading dim of the
    lane-dense (G, NC*O) output block) and leave a grid >= 2 so both v7x TensorCores
    get work.  G is also capped so the in-kernel f32 intermediates (~3 copies of
    (G*SL, NC*O)) plus double-buffered in/out blocks stay far inside even v7x's
    64 MiB VMEM.
    """
    bytes_per_slab = 4 * (sentence_length * input_size            # x block
                          + nc_times_o                            # out block
                          + 3 * sentence_length * nc_times_o)     # wide intermediates
    cap = max(8, int(vmem_budget_bytes // max(bytes_per_slab, 1)))
    limit = min(total, target, cap)
    best = None
    g = 8
    while g <= limit:
        if total % g == 0 and total // g >= 2:
            best = g
        g += 8
    if best is not None:
        return best
    # Fallback: one grid step covering everything (block dims == array dims is always
    # a legal BlockSpec). Only hit for tiny / awkward `total`.
    return total


def attention_per_label_word_level(x, weight, bias, context_vector,
                                   *, num_sentences, sentence_length,
                                   group_target=128):
    """x: (B, S, I) with S = num_sentences * sentence_length; weight: (O, I) (torch
    nn.Linear layout); bias: (O,); context_vector: (NC, O).
    Returns (B, num_sentences, NC, O)."""
    B, S, I = x.shape
    O = weight.shape[0]
    NC = context_vector.shape[0]
    assert S == num_sentences * sentence_length
    assert I == O, "module's final view requires input_size == output_size"

    SL = sentence_length
    total = B * num_sentences                       # independent (batch, sentence) slabs
    G = _pick_group_size(total, SL, I, NC * O, target=group_target)
    grid = total // G

    f32 = jnp.float32
    x_flat = x.reshape(total * SL, I)               # one row per word, features on lanes
    w_t = weight.T.astype(f32)                      # (I, O) -> x @ w_t == Linear(x) - b
    b2 = bias.reshape(1, O).astype(f32)
    cv_t = context_vector.T.astype(f32)             # (O, NC) -> no in-kernel transpose
    # Constant 0/1 expansion matrices, built once in XLA, broadcast to every grid step.
    emat = jnp.kron(jnp.eye(NC, dtype=f32), jnp.ones((1, O), dtype=f32))   # (NC, NC*O)
    tmat = jnp.kron(jnp.ones((1, NC), dtype=f32), jnp.eye(O, dtype=f32))   # (I,  NC*O)

    out = pl.pallas_call(
        _per_label_word_attn_kernel,
        out_shape=jax.ShapeDtypeStruct((total, NC * O), x.dtype),
        grid_spec=pltpu.PrefetchScalarGridSpec(
            num_scalar_prefetch=0,
            grid=(grid,),
            in_specs=[
                pl.BlockSpec((G * SL, I), lambda i: (i, 0)),       # streamed word rows
                pl.BlockSpec((I, O), lambda i: (0, 0)),            # broadcast params
                pl.BlockSpec((1, O), lambda i: (0, 0)),
                pl.BlockSpec((O, NC), lambda i: (0, 0)),
                pl.BlockSpec((NC, NC * O), lambda i: (0, 0)),
                pl.BlockSpec((I, NC * O), lambda i: (0, 0)),
            ],
            out_specs=pl.BlockSpec((G, NC * O), lambda i: (i, 0)),  # lane-dense rows
        ),
        compiler_params=pltpu.CompilerParams(
            dimension_semantics=("parallel",),
            vmem_limit_bytes=32 * 1024 * 1024,
        ),
    )(x_flat, w_t, b2, cv_t, emat, tmat)

    return out.reshape(B, num_sentences, NC, O)


def _reference(x, weight, bias, context_vector, num_sentences, sentence_length):
    # Pure-JAX transcription of the PyTorch forward, for correctness checking.
    O = weight.shape[0]
    h = jnp.tanh(x @ weight.T + bias)
    hr = h.reshape(-1, num_sentences, sentence_length, O)
    logits = jnp.einsum("bnto,co->bntc", hr, context_vector)
    lmax = jnp.max(logits, axis=-2, keepdims=True)
    att = jax.nn.softmax(logits - lmax, axis=-1)
    xr = x.reshape(-1, num_sentences, sentence_length, 1, O)
    return jnp.sum(att[..., None] * xr, axis=2)


if __name__ == "__main__":
    # Small, module-consistent shapes (sentence_length kept a multiple of 8 for clean
    # sublane-aligned leading-dim reshapes; total slabs = 16 -> G = 8, grid = 2).
    B = 2
    num_sentences = 8
    sentence_length = 8
    input_size = 32
    output_size = 32            # must equal input_size (see module's final view)
    num_classes = 8
    S = num_sentences * sentence_length

    key = jax.random.PRNGKey(0)
    kx, kw, kb, kc = jax.random.split(key, 4)

    x = jax.random.normal(kx, (B, S, input_size), dtype=jnp.float32)
    weight = jax.random.normal(kw, (output_size, input_size), dtype=jnp.float32) * 0.1
    bias = jax.random.normal(kb, (output_size,), dtype=jnp.float32) * 0.1
    context_vector = jax.random.normal(kc, (num_classes, output_size), dtype=jnp.float32)

    out = attention_per_label_word_level(
        x, weight, bias, context_vector,
        num_sentences=num_sentences, sentence_length=sentence_length,
    )
    out = jax.block_until_ready(out)

    ref = _reference(x, weight, bias, context_vector, num_sentences, sentence_length)
    assert out.shape == (B, num_sentences, num_classes, output_size)
    if not jnp.allclose(out, ref, atol=1e-5, rtol=1e-5):
        err = float(jnp.max(jnp.abs(out - ref)))
        raise AssertionError(f"Pallas kernel mismatch vs reference (max abs err {err})")
    print("KERNEL_OK")
</pallas_src>

<mosaic_0001>
module attributes {stable_mosaic.version = 11 : i64} {
  func.func @_per_label_word_attn_kernel(%arg0: i32, %arg1: memref<64x32xf32, #tpu.memory_space<vmem>>, %arg2: memref<32x32xf32, #tpu.memory_space<vmem>>, %arg3: memref<1x32xf32, #tpu.memory_space<vmem>>, %arg4: memref<32x8xf32, #tpu.memory_space<vmem>>, %arg5: memref<8x256xf32, #tpu.memory_space<vmem>>, %arg6: memref<32x256xf32, #tpu.memory_space<vmem>>, %arg7: memref<8x256xf32, #tpu.memory_space<vmem>>) attributes {dimension_semantics = [#tpu.dimension_semantics<parallel>], iteration_bounds = array<i64: 2>, scalar_prefetch = 0 : i64, scratch_operands = 0 : i64, tpu.core_type = #tpu.core_type<tc>, window_params = [{transform_indices = @transform_0, window_bounds = array<i64: 64, 32>}, {pipeline_mode = #tpu.pipeline_mode<synchronous>, transform_indices = @transform_1, window_bounds = array<i64: 32, 32>}, {pipeline_mode = #tpu.pipeline_mode<synchronous>, transform_indices = @transform_2, window_bounds = array<i64: 1, 32>}, {pipeline_mode = #tpu.pipeline_mode<synchronous>, transform_indices = @transform_3, window_bounds = array<i64: 32, 8>}, {pipeline_mode = #tpu.pipeline_mode<synchronous>, transform_indices = @transform_4, window_bounds = array<i64: 8, 256>}, {pipeline_mode = #tpu.pipeline_mode<synchronous>, transform_indices = @transform_5, window_bounds = array<i64: 32, 256>}, {transform_indices = @transform_6, window_bounds = array<i64: 8, 256>}]} {
    %c0 = arith.constant 0 : index
    %c0_0 = arith.constant 0 : index
    %0 = vector.load %arg1[%c0, %c0_0] : memref<64x32xf32, #tpu.memory_space<vmem>>, vector<64x32xf32>
    %c0_1 = arith.constant 0 : index
    %c0_2 = arith.constant 0 : index
    %1 = vector.load %arg2[%c0_1, %c0_2] : memref<32x32xf32, #tpu.memory_space<vmem>>, vector<32x32xf32>
    %cst = arith.constant dense<0.000000e+00> : vector<64x32xf32>
    %2 = tpu.matmul %0, %1, %cst {dimension_numbers = #tpu.dot_dimension_numbers<[1], [0], [0], [1], [0, 0, 1, 1], [], []>} : vector<64x32xf32>, vector<32x32xf32>, vector<64x32xf32> -> vector<64x32xf32>
    %c0_3 = arith.constant 0 : index
    %c0_4 = arith.constant 0 : index
    %3 = vector.load %arg3[%c0_3, %c0_4] : memref<1x32xf32, #tpu.memory_space<vmem>>, vector<1x32xf32>
    %4 = vector.broadcast %3 : vector<1x32xf32> to vector<64x32xf32>
    %5 = arith.addf %2, %4 : vector<64x32xf32>
    %6 = math.tanh %5 : vector<64x32xf32>
    %c0_5 = arith.constant 0 : index
    %c0_6 = arith.constant 0 : index
    %7 = vector.load %arg4[%c0_5, %c0_6] : memref<32x8xf32, #tpu.memory_space<vmem>>, vector<32x8xf32>
    %cst_7 = arith.constant dense<0.000000e+00> : vector<64x8xf32>
    %8 = tpu.matmul %6, %7, %cst_7 {dimension_numbers = #tpu.dot_dimension_numbers<[1], [0], [0], [1], [0, 0, 1, 1], [], []>} : vector<64x32xf32>, vector<32x8xf32>, vector<64x8xf32> -> vector<64x8xf32>
    %9 = vector.shape_cast %8 : vector<64x8xf32> to vector<8x8x8xf32>
    %cst_8 = arith.constant dense<0xFF800000> : vector<8x8xf32>
    %10 = vector.multi_reduction <maximumf>, %9, %cst_8 [1] : vector<8x8x8xf32> to vector<8x8xf32>
    %11 = vector.shape_cast %10 : vector<8x8xf32> to vector<8x1x8xf32>
    %12 = vector.broadcast %11 : vector<8x1x8xf32> to vector<8x8x8xf32>
    %13 = arith.subf %9, %12 : vector<8x8x8xf32>
    %cst_9 = arith.constant dense<0xFF800000> : vector<8x8xf32>
    %14 = vector.multi_reduction <maximumf>, %13, %cst_9 [2] : vector<8x8x8xf32> to vector<8x8xf32>
    %15 = vector.shape_cast %14 : vector<8x8xf32> to vector<8x8x1xf32>
    %16 = vector.broadcast %15 : vector<8x8x1xf32> to vector<8x8x8xf32>
    %17 = arith.subf %13, %16 : vector<8x8x8xf32>
    %18 = math.exp %17 : vector<8x8x8xf32>
    %cst_10 = arith.constant dense<0.000000e+00> : vector<8x8xf32>
    %19 = vector.multi_reduction <add>, %18, %cst_10 [2] : vector<8x8x8xf32> to vector<8x8xf32>
    %20 = vector.shape_cast %19 : vector<8x8xf32> to vector<8x8x1xf32>
    %21 = tpu.reciprocal %20 : vector<8x8x1xf32> -> vector<8x8x1xf32>
    %22 = vector.broadcast %21 : vector<8x8x1xf32> to vector<8x8x8xf32>
    %23 = arith.mulf %18, %22 : vector<8x8x8xf32>
    %24 = vector.shape_cast %23 : vector<8x8x8xf32> to vector<64x8xf32>
    %c0_11 = arith.constant 0 : index
    %c0_12 = arith.constant 0 : index
    %25 = vector.load %arg5[%c0_11, %c0_12] : memref<8x256xf32, #tpu.memory_space<vmem>>, vector<8x256xf32>
    %cst_13 = arith.constant dense<0.000000e+00> : vector<64x256xf32>
    %26 = tpu.matmul %24, %25, %cst_13 {dimension_numbers = #tpu.dot_dimension_numbers<[1], [0], [0], [1], [0, 0, 1, 1], [], []>} : vector<64x8xf32>, vector<8x256xf32>, vector<64x256xf32> -> vector<64x256xf32>
    %c0_14 = arith.constant 0 : index
    %c0_15 = arith.constant 0 : index
    %27 = vector.load %arg6[%c0_14, %c0_15] : memref<32x256xf32, #tpu.memory_space<vmem>>, vector<32x256xf32>
    %cst_16 = arith.constant dense<0.000000e+00> : vector<64x256xf32>
    %28 = tpu.matmul %0, %27, %cst_16 {dimension_numbers = #tpu.dot_dimension_numbers<[1], [0], [0], [1], [0, 0, 1, 1], [], []>} : vector<64x32xf32>, vector<32x256xf32>, vector<64x256xf32> -> vector<64x256xf32>
    %29 = arith.mulf %26, %28 : vector<64x256xf32>
    %30 = vector.shape_cast %29 : vector<64x256xf32> to vector<8x8x256xf32>
    %cst_17 = arith.constant dense<0.000000e+00> : vector<8x256xf32>
    %31 = vector.multi_reduction <add>, %30, %cst_17 [1] : vector<8x8x256xf32> to vector<8x256xf32>
    %c0_18 = arith.constant 0 : index
    %c0_19 = arith.constant 0 : index
    %32 = vector.load %arg7[%c0_18, %c0_19] : memref<8x256xf32, #tpu.memory_space<vmem>>, vector<8x256xf32>
    tpu.vector_store %arg7[%c0_18, %c0_19], %31 {strides = array<i32>} : memref<8x256xf32, #tpu.memory_space<vmem>>, vector<8x256xf32>,
    return
  }
  func.func @transform_0(%arg0: i32) -> (i32, i32) {
    %c0_i32 = arith.constant 0 : i32
    %c0_i32_0 = arith.constant 0 : i32
    return %arg0, %c0_i32 : i32, i32
  }
  func.func @transform_1(%arg0: i32) -> (i32, i32) {
    %c0_i32 = arith.constant 0 : i32
    %c0_i32_0 = arith.constant 0 : i32
    %c0_i32_1 = arith.constant 0 : i32
    return %c0_i32, %c0_i32_0 : i32, i32
  }
  func.func @transform_2(%arg0: i32) -> (i32, i32) {
    %c0_i32 = arith.constant 0 : i32
    %c0_i32_0 = arith.constant 0 : i32
    %c0_i32_1 = arith.constant 0 : i32
    return %c0_i32, %c0_i32_0 : i32, i32
  }
  func.func @transform_3(%arg0: i32) -> (i32, i32) {
    %c0_i32 = arith.constant 0 : i32
    %c0_i32_0 = arith.constant 0 : i32
    %c0_i32_1 = arith.constant 0 : i32
    return %c0_i32, %c0_i32_0 : i32, i32
  }
  func.func @transform_4(%arg0: i32) -> (i32, i32) {
    %c0_i32 = arith.constant 0 : i32
    %c0_i32_0 = arith.constant 0 : i32
    %c0_i32_1 = arith.constant 0 : i32
    return %c0_i32, %c0_i32_0 : i32, i32
  }
  func.func @transform_5(%arg0: i32) -> (i32, i32) {
    %c0_i32 = arith.constant 0 : i32
    %c0_i32_0 = arith.constant 0 : i32
    %c0_i32_1 = arith.constant 0 : i32
    return %c0_i32, %c0_i32_0 : i32, i32
  }
  func.func @transform_6(%arg0: i32) -> (i32, i32) {
    %c0_i32 = arith.constant 0 : i32
    %c0_i32_0 = arith.constant 0 : i32
    return %arg0, %c0_i32 : i32, i32
  }
}

</mosaic_0001>

<llo_original>
// kernel: tpu_custom_call.1
$region0: #{tpu_custom_call.1}
  #allocation0 [shape = 'u32[]', space=smem, size = 0x4, offset = 0x4, fixed_abs, tag = 'smem constant byte address 0x4 - core index']
  #allocation1 [shape = 'u32[144,128]{1,0:T(1,128)}', space=vmem, size = 0x12000, scoped, tag = 'internal scratch']
  %s0 = inlined_call_operand.vmem [shape: f32[128,32], index: 0, kind: input, shape index: {}]
  %s1 = inlined_call_operand.vmem [shape: f32[32,32], index: 1, kind: input, shape index: {}]
  %s2 = inlined_call_operand.vmem [shape: f32[1,32], index: 2, kind: input, shape index: {}]
  %s3 = inlined_call_operand.vmem [shape: f32[32,8], index: 3, kind: input, shape index: {}]
  %s4 = inlined_call_operand.vmem [shape: f32[8,256], index: 4, kind: input, shape index: {}]
  %s5 = inlined_call_operand.vmem [shape: f32[32,256], index: 5, kind: input, shape index: {}]
  %s6 = inlined_call_operand.hbm [shape: f32[16,256], index: 6, kind: output, shape index: {}]
  %s7 = sld [smem:[#allocation0]]
  $region57: #{tpu_custom_call.1} parent=0
    _
  %s9 = ssub.s32 1, %s7
  %s10 = scalar_select 0, %s9, %s7
  $region1: #{tpu_custom_call.1} parent=0
    #allocation2 [shape = 'u8[16384]{0}', space=vmem, size = 0x4000, scoped, tag = 'output window, operand 0']
    #allocation3 [shape = 's32[2]{0}', space=sflag, size = 0x8, scoped, tag = 'scoped memory for tpu_custom_call.1']
    %11 = vsyncpa [#allocation3], 0
    %s12 = scalar_lea.sflag [#allocation3], 1
    %13 = vsyncpa %s12, 0
    loop: start=0, step=1, limit=4
    $region2: #{tpu_custom_call.1} parent=1 // loop_pre_header
      _
    $region3: #{tpu_custom_call.1} parent=1 // loop_header
      %s15 = sphi 0, %s19
      %p16 = scmp.ge.s32.totalorder %s15, 4
      %s25 = sphi 0, %s27
      %s28 = sphi 0, %s25
      %s29 = sphi 0, %s28
      %s45 = sphi 0, %s29
      %s49 = sphi 0, %s49
      %s51 = sphi 0, %s49
      %s52 = sphi 0, %s51
      %s66 = sphi 0, %s52
      %s70 = sphi 0, %s70
      %s72 = sphi 0, %s70
      %s73 = sphi 0, %s72
      %s87 = sphi 0, %s73
      %s91 = sphi 0, %s91
      %s93 = sphi 0, %s91
      %s94 = sphi 0, %s93
      %s108 = sphi 0, %s94
      %s112 = sphi 0, %s112
      %s114 = sphi 0, %s112
      %s115 = sphi 0, %s114
      %s129 = sphi 0, %s115
      %s133 = sphi 0, %s133
      %s135 = sphi 0, %s133
      %s136 = sphi 0, %s135
      %s150 = sphi 0, %s136
      %s156 = sphi 0, %s158
      %s159 = sphi 0, %s156
      %s160 = sphi 0, %s159
      %s176 = sphi 0, %s160
    $region4: #{tpu_custom_call.1} parent=1 // loop_header_branch
      %18 = sbr.rel (%p16) target = $region8
    $region5: #{tpu_custom_call.1} parent=1 // loop_body
      %s20 = ssub.s32 %s15, 1
      %s21 = ssub.s32 %s15, 2
      %s22 = sadd.s32 %s15, 1
      %s23 = ssub.s32 %s15, %s22
      %p24 = scmp.eq.s32.totalorder %s23, 0
      %s26 = sadd.s32 %s25, 1
      %s27 = scalar_select %p24, %s25, %s26
      %p30 = pneg %p24
      %p31 = scmp.eq.s32.totalorder %s15, 1
      %p32 = por %p30, %p31
      %p33 = scmp.ne.s32.totalorder %s25, %s28
      %p34 = scmp.eq.s32.totalorder %s15, 0
      %p35 = por %p33, %p34
      %p36 = scmp.ne.s32.totalorder %s25, %s28
      %p37 = scmp.eq.s32.totalorder %s20, 1
      %p38 = por %p36, %p37
      %p39 = scmp.ne.s32.totalorder %s28, %s29
      %p40 = scmp.eq.s32.totalorder %s20, 0
      %p41 = por %p39, %p40
      %p42 = scmp.ne.s32.totalorder %s28, %s29
      %p43 = scmp.eq.s32.totalorder %s21, 1
      %p44 = por %p42, %p43
      %p46 = scmp.ne.s32.totalorder %s29, %s45
      %p47 = scmp.eq.s32.totalorder %s21, 0
      %p48 = por %p46, %p47
      %s50 = sadd.s32 %s49, 1
      %p53 = scmp.eq.s32.totalorder %s15, 1
      %p54 = scmp.ne.s32.totalorder %s49, %s51
      %p55 = scmp.eq.s32.totalorder %s15, 0
      %p56 = por %p54, %p55
      %p57 = scmp.ne.s32.totalorder %s49, %s51
      %p58 = scmp.eq.s32.totalorder %s20, 1
      %p59 = por %p57, %p58
      %p60 = scmp.ne.s32.totalorder %s51, %s52
      %p61 = scmp.eq.s32.totalorder %s20, 0
      %p62 = por %p60, %p61
      %p63 = scmp.ne.s32.totalorder %s51, %s52
      %p64 = scmp.eq.s32.totalorder %s21, 1
      %p65 = por %p63, %p64
      %p67 = scmp.ne.s32.totalorder %s52, %s66
      %p68 = scmp.eq.s32.totalorder %s21, 0
      %p69 = por %p67, %p68
      %s71 = sadd.s32 %s70, 1
      %p74 = scmp.eq.s32.totalorder %s15, 1
      %p75 = scmp.ne.s32.totalorder %s70, %s72
      %p76 = scmp.eq.s32.totalorder %s15, 0
      %p77 = por %p75, %p76
      %p78 = scmp.ne.s32.totalorder %s70, %s72
      %p79 = scmp.eq.s32.totalorder %s20, 1
      %p80 = por %p78, %p79
      %p81 = scmp.ne.s32.totalorder %s72, %s73
      %p82 = scmp.eq.s32.totalorder %s20, 0
      %p83 = por %p81, %p82
      %p84 = scmp.ne.s32.totalorder %s72, %s73
      %p85 = scmp.eq.s32.totalorder %s21, 1
      %p86 = por %p84, %p85
      %p88 = scmp.ne.s32.totalorder %s73, %s87
      %p89 = scmp.eq.s32.totalorder %s21, 0
      %p90 = por %p88, %p89
      %s92 = sadd.s32 %s91, 1
      %p95 = scmp.eq.s32.totalorder %s15, 1
      %p96 = scmp.ne.s32.totalorder %s91, %s93
      %p97 = scmp.eq.s32.totalorder %s15, 0
      %p98 = por %p96, %p97
      %p99 = scmp.ne.s32.totalorder %s91, %s93
      %p100 = scmp.eq.s32.totalorder %s20, 1
      %p101 = por %p99, %p100
      %p102 = scmp.ne.s32.totalorder %s93, %s94
      %p103 = scmp.eq.s32.totalorder %s20, 0
      %p104 = por %p102, %p103
      %p105 = scmp.ne.s32.totalorder %s93, %s94
      %p106 = scmp.eq.s32.totalorder %s21, 1
      %p107 = por %p105, %p106
      %p109 = scmp.ne.s32.totalorder %s94, %s108
      %p110 = scmp.eq.s32.totalorder %s21, 0
      %p111 = por %p109, %p110
      %s113 = sadd.s32 %s112, 1
      %p116 = scmp.eq.s32.totalorder %s15, 1
      %p117 = scmp.ne.s32.totalorder %s112, %s114
      %p118 = scmp.eq.s32.totalorder %s15, 0
      %p119 = por %p117, %p118
      %p120 = scmp.ne.s32.totalorder %s112, %s114
      %p121 = scmp.eq.s32.totalorder %s20, 1
      %p122 = por %p120, %p121
      %p123 = scmp.ne.s32.totalorder %s114, %s115
      %p124 = scmp.eq.s32.totalorder %s20, 0
      %p125 = por %p123, %p124
      %p126 = scmp.ne.s32.totalorder %s114, %s115
      %p127 = scmp.eq.s32.totalorder %s21, 1
      %p128 = por %p126, %p127
      %p130 = scmp.ne.s32.totalorder %s115, %s129
      %p131 = scmp.eq.s32.totalorder %s21, 0
      %p132 = por %p130, %p131
      %s134 = sadd.s32 %s133, 1
      %p137 = scmp.eq.s32.totalorder %s15, 1
      %p138 = scmp.ne.s32.totalorder %s133, %s135
      %p139 = scmp.eq.s32.totalorder %s15, 0
      %p140 = por %p138, %p139
      %p141 = scmp.ne.s32.totalorder %s133, %s135
      %p142 = scmp.eq.s32.totalorder %s20, 1
      %p143 = por %p141, %p142
      %p144 = scmp.ne.s32.totalorder %s135, %s136
      %p145 = scmp.eq.s32.totalorder %s20, 0
      %p146 = por %p144, %p145
      %p147 = scmp.ne.s32.totalorder %s135, %s136
      %p148 = scmp.eq.s32.totalorder %s21, 1
      %p149 = por %p147, %p148
      %p151 = scmp.ne.s32.totalorder %s136, %s150
      %p152 = scmp.eq.s32.totalorder %s21, 0
      %p153 = por %p151, %p152
      %s154 = ssub.s32 %s15, %s22
      %p155 = scmp.eq.s32.totalorder %s154, 0
      %s157 = sadd.s32 %s156, 1
      %s158 = scalar_select %p155, %s156, %s157
      %p161 = pneg %p155
      %p162 = scmp.eq.s32.totalorder %s15, 1
      %p163 = por %p161, %p162
      %p164 = scmp.ne.s32.totalorder %s156, %s159
      %p165 = scmp.eq.s32.totalorder %s15, 0
      %p166 = por %p164, %p165
      %p167 = scmp.ne.s32.totalorder %s156, %s159
      %p168 = scmp.eq.s32.totalorder %s20, 1
      %p169 = por %p167, %p168
      %p170 = scmp.ne.s32.totalorder %s159, %s160
      %p171 = scmp.eq.s32.totalorder %s20, 0
      %p172 = por %p170, %p171
      %p173 = scmp.ne.s32.totalorder %s159, %s160
      %p174 = scmp.eq.s32.totalorder %s21, 1
      %p175 = por %p173, %p174
      %p177 = scmp.ne.s32.totalorder %s160, %s176
      %p178 = scmp.eq.s32.totalorder %s21, 0
      %p179 = por %p177, %p178
      %p180 = scmp.le.s32.totalorder 1, %s15
      %p181 = scmp.lt.s32.totalorder %s15, 3
      %p182 = pnand %p180, %p181
      %p183 = pneg %p182
      // Predicated region
      $region9: #{tpu_custom_call.1} parent=5 // pred_check
        _
      $region10: #{tpu_custom_call.1} parent=5 // pred_check_branch
        %185 = sbr.rel (%p182) target = $region12
      $region11: #{tpu_custom_call.1} parent=5 // pred_region
        %s186 = ssub.s32 %s15, 1
        // Predicated region
        $region13: #{tpu_custom_call.1} parent=11 // pred_check
          %p187 = pneg %p62
        $region14: #{tpu_custom_call.1} parent=11 // pred_check_branch
          %189 = sbr.rel (%p187) target = $region16
        $region15: #{tpu_custom_call.1} parent=11 // pred_region
          _
        $region16: #{tpu_custom_call.1} parent=11 // pred_fallthru
          _
        // Predicated region
        $region17: #{tpu_custom_call.1} parent=11 // pred_check
          %p190 = pneg %p83
        $region18: #{tpu_custom_call.1} parent=11 // pred_check_branch
          %192 = sbr.rel (%p190) target = $region20
        $region19: #{tpu_custom_call.1} parent=11 // pred_region
          _
        $region20: #{tpu_custom_call.1} parent=11 // pred_fallthru
          _
        // Predicated region
        $region21: #{tpu_custom_call.1} parent=11 // pred_check
          %p193 = pneg %p104
        $region22: #{tpu_custom_call.1} parent=11 // pred_check_branch
          %195 = sbr.rel (%p193) target = $region24
        $region23: #{tpu_custom_call.1} parent=11 // pred_region
          _
        $region24: #{tpu_custom_call.1} parent=11 // pred_fallthru
          _
        // Predicated region
        $region25: #{tpu_custom_call.1} parent=11 // pred_check
          %p196 = pneg %p125
        $region26: #{tpu_custom_call.1} parent=11 // pred_check_branch
          %198 = sbr.rel (%p196) target = $region28
        $region27: #{tpu_custom_call.1} parent=11 // pred_region
          _
        $region28: #{tpu_custom_call.1} parent=11 // pred_fallthru
          _
        // Predicated region
        $region29: #{tpu_custom_call.1} parent=11 // pred_check
          %p199 = pneg %p146
        $region30: #{tpu_custom_call.1} parent=11 // pred_check_branch
          %201 = sbr.rel (%p199) target = $region32
        $region31: #{tpu_custom_call.1} parent=11 // pred_region
          _
        $region32: #{tpu_custom_call.1} parent=11 // pred_fallthru
          _
      $region12: #{tpu_custom_call.1} parent=5 // pred_fallthru
        _
      %p202 = scmp.lt.s32.totalorder %s15, 2
      // Predicated region
      $region33: #{tpu_custom_call.1} parent=5 // pred_check
        %p203 = pneg %p202
      $region34: #{tpu_custom_call.1} parent=5 // pred_check_branch
        %205 = sbr.rel (%p203) target = $region36
      $region35: #{tpu_custom_call.1} parent=5 // pred_region
        // Predicated region
        $region37: #{tpu_custom_call.1} parent=35 // pred_check
          %p206 = pneg %p35
        $region38: #{tpu_custom_call.1} parent=35 // pred_check_branch
          %208 = sbr.rel (%p206) target = $region40
        $region39: #{tpu_custom_call.1} parent=35 // pred_region
          %s209 = smul.u32 8, %s15
          %p210 = scmp.lt.s32.totalorder %s209, 15
          %s211 = scalar_select %p210, %s209, 15
          %s212 = smul.addr %s211, 8
          %s213 = scalar_lea.vmem %s0, %s212
          %s214 = smul.u32 8, %s15
        $region40: #{tpu_custom_call.1} parent=35 // pred_fallthru
          _
      $region36: #{tpu_custom_call.1} parent=5 // pred_fallthru
        _
      %p215 = scmp.le.s32.totalorder 1, %s15
      %p216 = scmp.lt.s32.totalorder %s15, 3
      %p217 = pnand %p215, %p216
      %p218 = pneg %p217
      // Predicated region
      $region41: #{tpu_custom_call.1} parent=5 // pred_check
        _
      $region42: #{tpu_custom_call.1} parent=5 // pred_check_branch
        %220 = sbr.rel (%p217) target = $region44
      $region43: #{tpu_custom_call.1} parent=5 // pred_region
        %s221 = ssub.s32 %s15, 1
        %s222 = smul.u32 8, %s20
        %p223 = scmp.lt.s32.totalorder %s222, 15
        %s224 = scalar_select %p223, %s222, 15
        %s225 = smul.addr %s224, 8
        %s226 = scalar_lea.vmem %s0, %s225
        %p227 = pneg %p41
        %p228 = pneg %p38
        %p229 = pneg %p62
        %p230 = pneg %p59
        %p231 = pneg %p83
        %p232 = pneg %p80
        %p233 = pneg %p104
        %p234 = pneg %p101
        %p235 = pneg %p125
        %p236 = pneg %p122
        %p237 = pneg %p146
        %p238 = pneg %p143
        %p239 = pneg %p172
        %p240 = pneg %p169
        %s241 = sand.u32 %s159, 1
        %s242 = scalar_lea.sflag [#allocation3], %s241
        %s243 = sand.u32 %s159, 1
        %s244 = smul.addr %s243, 16
        %s245 = scalar_lea.vmem [#allocation2], %s244
        %s246 = smul.u32 8, %s20
        %p247 = scmp.lt.s32.totalorder %s246, 15
        %s248 = scalar_select %p247, %s246, 15
        %s249 = smul.addr %s248, 8
        %s250 = scalar_lea.vmem %s0, %s249
        %s251 = smul.u32 8, %s20
        %v252 = vld [vmem:[%s250] sm:$0xff]
        %v253 = vld [vmem:[%s250 + $0x8] sm:$0xff]
        %v254 = vld [vmem:[%s250 + $0x10] sm:$0xff]
        %v255 = vld [vmem:[%s250 + $0x18] sm:$0xff]
        %v256 = vld [vmem:[%s250 + $0x20] sm:$0xff]
        %v257 = vld [vmem:[%s250 + $0x28] sm:$0xff]
        %v258 = vld [vmem:[%s250 + $0x30] sm:$0xff]
        %v259 = vld [vmem:[%s250 + $0x38] sm:$0xff]
        %v260 = vld [vmem:[%s1] sm:$0xff]
        %v261 = vld [vmem:[%s1 + $0x8] sm:$0xff]
        %v262 = vld [vmem:[%s1 + $0x10] sm:$0xff]
        %v263 = vld [vmem:[%s1 + $0x18] sm:$0xff]
        %v264 = vld [vmem:[%s2] sm:$0x1]
        %v266 = vlaneseq
        %v267 = vshrl.u32 %v266, 7
        %v268 = vsub.s32 0, %v267
        %v269 = vrot.slane %v264, %v268
        %vm271 = vcmask 261120
        %v273 = vsel %vm271, %v252, 0
        %v276 = vsel %vm271, %v253, 0
        %v279 = vsel %vm271, %v254, 0
        %v282 = vsel %vm271, %v255, 0
        %v285 = vsel %vm271, %v256, 0
        %v288 = vsel %vm271, %v257, 0
        %v291 = vsel %vm271, %v258, 0
        %v294 = vsel %vm271, %v259, 0
        %296 = vmatprep.subr.mxu0 0.0
        %297 = vmatpush1.msra.mxu0 %v260
        %298 = vmatprep.subr.mxu0 0.0
        %299 = vmatpush1.msra.mxu0 %v261
        %300 = vmatprep.subr.mxu0 0.0
        %301 = vmatpush1.msra.mxu0 %v262
        %302 = vmatprep.subr.mxu0 0.0
        %303 = vmatpush1.msra.mxu0 %v263
        %304 = vmatprep.subr.mxu0 0.0
        %305 = vmatpush1.msra.mxu0 0.0
        %306 = vmatprep.subr.mxu0 0.0
        %307 = vmatpush1.msra.mxu0 0.0
        %308 = vmatprep.subr.mxu0 0.0
        %309 = vmatpush1.msra.mxu0 0.0
        %310 = vmatprep.subr.mxu0 0.0
        %311 = vmatpush1.msra.mxu0 0.0
        %312 = vmatprep.subr.mxu0 0.0
        %313 = vmatpush1.msra.mxu0 0.0
        %314 = vmatprep.subr.mxu0 0.0
        %315 = vmatpush1.msra.mxu0 0.0
        %316 = vmatprep.subr.mxu0 0.0
        %317 = vmatpush1.msra.mxu0 0.0
        %318 = vmatprep.subr.mxu0 0.0
        %319 = vmatpush1.msra.mxu0 0.0
        %320 = vmatprep.subr.mxu0 0.0
        %321 = vmatpush1.msra.mxu0 0.0
        %322 = vmatprep.subr.mxu0 0.0
        %323 = vmatpush1.msra.mxu0 0.0
        %324 = vmatprep.subr.mxu0 0.0
        %325 = vmatpush1.msra.mxu0 0.0
        %326 = vmatprep.subr.mxu0 0.0
        %327 = vmatpush1.msra.mxu0 0.0
        %328 = vmatprep.subr.mxu0 0.0
        %329 = vmatpush1.msra.mxu0 0.0
        %330 = vmatprep.subr.mxu0 0.0
        %331 = vmatpush1.msra.mxu0 0.0
        %332 = vmatprep.subr.mxu0 0.0
        %333 = vmatpush1.msra.mxu0 0.0
        %334 = vmatprep.subr.mxu0 0.0
        %335 = vmatpush1.msra.mxu0 0.0
        %336 = vmatprep.subr.mxu0 0.0
        %337 = vmatpush1.msra.mxu0 0.0
        %338 = vmatprep.subr.mxu0 0.0
        %339 = vmatpush1.msra.mxu0 0.0
        %340 = vmatprep.subr.mxu0 0.0
        %341 = vmatpush1.msra.mxu0 0.0
        %342 = vmatprep.subr.mxu0 0.0
        %343 = vmatpush1.msra.mxu0 0.0
        %344 = vmatprep.subr.mxu0 0.0
        %345 = vmatpush1.msra.mxu0 0.0
        %346 = vmatprep.subr.mxu0 0.0
        %347 = vmatpush1.msra.mxu0 0.0
        %348 = vmatprep.subr.mxu0 0.0
        %349 = vmatpush1.msra.mxu0 0.0
        %350 = vmatprep.subr.mxu0 0.0
        %351 = vmatpush1.msra.mxu0 0.0
        %352 = vmatprep.subr.mxu0 0.0
        %353 = vmatpush1.msra.mxu0 0.0
        %354 = vmatprep.subr.mxu0 0.0
        %355 = vmatpush1.msra.mxu0 0.0
        %356 = vmatprep.subr.mxu0 0.0
        %357 = vmatpush1.msra.mxu0 0.0
        %358 = vmatprep.subr.mxu0 0.0
        %359 = vmatpush1.msra.mxu0 0.0
        %360 = vmatprep.mubr.f32.mxu0 0.0
        %361 = vmatmul.mubr.f32.gmra.mrb[0].mxu0 %v273
        %v362 = vpop.f32.mrb[0].mxu0
        %v363 = vadd.f32 %v269, %v362
        %v364 = vpop.f32.mrb[0].mxu0
        %365 = vmatprep.mubr.f32.mxu0 0.0
        %366 = vmatmul.mubr.f32.gmra.mrb[0].mxu0 %v276
        %v367 = vpop.f32.mrb[0].mxu0
        %v368 = vadd.f32 %v269, %v367
        %v369 = vpop.f32.mrb[0].mxu0
        %370 = vmatprep.mubr.f32.mxu0 0.0
        %371 = vmatmul.mubr.f32.gmra.mrb[0].mxu0 %v279
        %v372 = vpop.f32.mrb[0].mxu0
        %v373 = vadd.f32 %v269, %v372
        %v374 = vpop.f32.mrb[0].mxu0
        %375 = vmatprep.mubr.f32.mxu0 0.0
        %376 = vmatmul.mubr.f32.gmra.mrb[0].mxu0 %v282
        %v377 = vpop.f32.mrb[0].mxu0
        %v378 = vadd.f32 %v269, %v377
        %v379 = vpop.f32.mrb[0].mxu0
        %380 = vmatprep.mubr.f32.mxu0 0.0
        %381 = vmatmul.mubr.f32.gmra.mrb[0].mxu0 %v285
        %v382 = vpop.f32.mrb[0].mxu0
        %v383 = vadd.f32 %v269, %v382
        %v384 = vpop.f32.mrb[0].mxu0
        %385 = vmatprep.mubr.f32.mxu0 0.0
        %386 = vmatmul.mubr.f32.gmra.mrb[0].mxu0 %v288
        %v387 = vpop.f32.mrb[0].mxu0
        %v388 = vadd.f32 %v269, %v387
        %v389 = vpop.f32.mrb[0].mxu0
        %390 = vmatprep.mubr.f32.mxu0 0.0
        %391 = vmatmul.mubr.f32.gmra.mrb[0].mxu0 %v291
        %v392 = vpop.f32.mrb[0].mxu0
        %v393 = vadd.f32 %v269, %v392
        %v394 = vpop.f32.mrb[0].mxu0
        %395 = vmatprep.mubr.f32.mxu0 0.0
        %396 = vmatmul.mubr.f32.gmra.mrb[0].mxu0 %v294
        %v397 = vpop.f32.mrb[0].mxu0
        %v398 = vadd.f32 %v269, %v397
        %v399 = vpop.f32.mrb[0].mxu0
        %400 = vdwg.mxu0
        %v401 = vtanh.pop %v363
        %v402 = vtanh.pop %v368
        %v403 = vtanh.pop %v373
        %v404 = vtanh.pop %v378
        %v405 = vtanh.pop %v383
        %v406 = vtanh.pop %v388
        %v407 = vtanh.pop %v393
        %v408 = vtanh.pop %v398
        %v409 = vld [vmem:[%s3] sm:$0xff]
        %v410 = vld [vmem:[%s3 + $0x8] sm:$0xff]
        %v411 = vld [vmem:[%s3 + $0x10] sm:$0xff]
        %v412 = vld [vmem:[%s3 + $0x18] sm:$0xff]
        %v414 = vsel %vm271, %v401, 0
        %v417 = vsel %vm271, %v402, 0
        %v420 = vsel %vm271, %v403, 0
        %v423 = vsel %vm271, %v404, 0
        %v426 = vsel %vm271, %v405, 0
        %v429 = vsel %vm271, %v406, 0
        %v432 = vsel %vm271, %v407, 0
        %v435 = vsel %vm271, %v408, 0
        %437 = vmatprep.subr.mxu0 0.0
        %438 = vmatpush1.msra.mxu0 %v409
        %439 = vmatprep.subr.mxu0 0.0
        %440 = vmatpush1.msra.mxu0 %v410
        %441 = vmatprep.subr.mxu0 0.0
        %442 = vmatpush1.msra.mxu0 %v411
        %443 = vmatprep.subr.mxu0 0.0
        %444 = vmatpush1.msra.mxu0 %v412
        %445 = vmatprep.subr.mxu0 0.0
        %446 = vmatpush1.msra.mxu0 0.0
        %447 = vmatprep.subr.mxu0 0.0
        %448 = vmatpush1.msra.mxu0 0.0
        %449 = vmatprep.subr.mxu0 0.0
        %450 = vmatpush1.msra.mxu0 0.0
        %451 = vmatprep.subr.mxu0 0.0
        %452 = vmatpush1.msra.mxu0 0.0
        %453 = vmatprep.subr.mxu0 0.0
        %454 = vmatpush1.msra.mxu0 0.0
        %455 = vmatprep.subr.mxu0 0.0
        %456 = vmatpush1.msra.mxu0 0.0
        %457 = vmatprep.subr.mxu0 0.0
        %458 = vmatpush1.msra.mxu0 0.0
        %459 = vmatprep.subr.mxu0 0.0
        %460 = vmatpush1.msra.mxu0 0.0
        %461 = vmatprep.subr.mxu0 0.0
        %462 = vmatpush1.msra.mxu0 0.0
        %463 = vmatprep.subr.mxu0 0.0
        %464 = vmatpush1.msra.mxu0 0.0
        %465 = vmatprep.subr.mxu0 0.0
        %466 = vmatpush1.msra.mxu0 0.0
        %467 = vmatprep.subr.mxu0 0.0
        %468 = vmatpush1.msra.mxu0 0.0
        %469 = vmatprep.subr.mxu0 0.0
        %470 = vmatpush1.msra.mxu0 0.0
        %471 = vmatprep.subr.mxu0 0.0
        %472 = vmatpush1.msra.mxu0 0.0
        %473 = vmatprep.subr.mxu0 0.0
        %474 = vmatpush1.msra.mxu0 0.0
        %475 = vmatprep.subr.mxu0 0.0
        %476 = vmatpush1.msra.mxu0 0.0
        %477 = vmatprep.subr.mxu0 0.0
        %478 = vmatpush1.msra.mxu0 0.0
        %479 = vmatprep.subr.mxu0 0.0
        %480 = vmatpush1.msra.mxu0 0.0
        %481 = vmatprep.subr.mxu0 0.0
        %482 = vmatpush1.msra.mxu0 0.0
        %483 = vmatprep.subr.mxu0 0.0
        %484 = vmatpush1.msra.mxu0 0.0
        %485 = vmatprep.subr.mxu0 0.0
        %486 = vmatpush1.msra.mxu0 0.0
        %487 = vmatprep.subr.mxu0 0.0
        %488 = vmatpush1.msra.mxu0 0.0
        %489 = vmatprep.subr.mxu0 0.0
        %490 = vmatpush1.msra.mxu0 0.0
        %491 = vmatprep.subr.mxu0 0.0
        %492 = vmatpush1.msra.mxu0 0.0
        %493 = vmatprep.subr.mxu0 0.0
        %494 = vmatpush1.msra.mxu0 0.0
        %495 = vmatprep.subr.mxu0 0.0
        %496 = vmatpush1.msra.mxu0 0.0
        %497 = vmatprep.subr.mxu0 0.0
        %498 = vmatpush1.msra.mxu0 0.0
        %499 = vmatprep.subr.mxu0 0.0
        %500 = vmatpush1.msra.mxu0 0.0
        %501 = vmatprep.mubr.f32.mxu0 0.0
        %502 = vmatmul.mubr.f32.gmra.mrb[0].mxu0 %v414
        %v503 = vpop.f32.mrb[0].mxu0
        %v504 = vadd.f32 0.0, %v503
        %v505 = vpop.f32.mrb[0].mxu0
        %506 = vmatprep.mubr.f32.mxu0 0.0
        %507 = vmatmul.mubr.f32.gmra.mrb[0].mxu0 %v417
        %v508 = vpop.f32.mrb[0].mxu0
        %v509 = vadd.f32 0.0, %v508
        %v510 = vpop.f32.mrb[0].mxu0
        %511 = vmatprep.mubr.f32.mxu0 0.0
        %512 = vmatmul.mubr.f32.gmra.mrb[0].mxu0 %v420
        %v513 = vpop.f32.mrb[0].mxu0
        %v514 = vadd.f32 0.0, %v513
        %v515 = vpop.f32.mrb[0].mxu0
        %516 = vmatprep.mubr.f32.mxu0 0.0
        %517 = vmatmul.mubr.f32.gmra.mrb[0].mxu0 %v423
        %v518 = vpop.f32.mrb[0].mxu0
        %v519 = vadd.f32 0.0, %v518
        %v520 = vpop.f32.mrb[0].mxu0
        %521 = vmatprep.mubr.f32.mxu0 0.0
        %522 = vmatmul.mubr.f32.gmra.mrb[0].mxu0 %v426
        %v523 = vpop.f32.mrb[0].mxu0
        %v524 = vadd.f32 0.0, %v523
        %v525 = vpop.f32.mrb[0].mxu0
        %526 = vmatprep.mubr.f32.mxu0 0.0
        %527 = vmatmul.mubr.f32.gmra.mrb[0].mxu0 %v429
        %v528 = vpop.f32.mrb[0].mxu0
        %v529 = vadd.f32 0.0, %v528
        %v530 = vpop.f32.mrb[0].mxu0
        %531 = vmatprep.mubr.f32.mxu0 0.0
        %532 = vmatmul.mubr.f32.gmra.mrb[0].mxu0 %v432
        %v533 = vpop.f32.mrb[0].mxu0
        %v534 = vadd.f32 0.0, %v533
        %v535 = vpop.f32.mrb[0].mxu0
        %536 = vmatprep.mubr.f32.mxu0 0.0
        %537 = vmatmul.mubr.f32.gmra.mrb[0].mxu0 %v435
        %v538 = vpop.f32.mrb[0].mxu0
        %v539 = vadd.f32 0.0, %v538
        %v540 = vpop.f32.mrb[0].mxu0
        %541 = vdwg.mxu0
        %vm542 = vcmask 64512
        %v543 = vsel %vm542, %v504, -inf
        %v544 = vrot.slane %v543, 4
        %v545 = vmax.f32 %v543, %v544
        %v546 = vrot.slane %v545, 2
        %v547 = vmax.f32 %v545, %v546
        %v548 = vrot.slane %v547, 1
        %v549 = vmax.f32 %v547, %v548
        %v550 = vsel %vm542, %v509, -inf
        %v551 = vrot.slane %v550, 4
        %v552 = vmax.f32 %v550, %v551
        %v553 = vrot.slane %v552, 2
        %v554 = vmax.f32 %v552, %v553
        %v555 = vrot.slane %v554, 1
        %v556 = vmax.f32 %v554, %v555
        %v557 = vsel %vm542, %v514, -inf
        %v558 = vrot.slane %v557, 4
        %v559 = vmax.f32 %v557, %v558
        %v560 = vrot.slane %v559, 2
        %v561 = vmax.f32 %v559, %v560
        %v562 = vrot.slane %v561, 1
        %v563 = vmax.f32 %v561, %v562
        %v564 = vsel %vm542, %v519, -inf
        %v565 = vrot.slane %v564, 4
        %v566 = vmax.f32 %v564, %v565
        %v567 = vrot.slane %v566, 2
        %v568 = vmax.f32 %v566, %v567
        %v569 = vrot.slane %v568, 1
        %v570 = vmax.f32 %v568, %v569
        %v571 = vsel %vm542, %v524, -inf
        %v572 = vrot.slane %v571, 4
        %v573 = vmax.f32 %v571, %v572
        %v574 = vrot.slane %v573, 2
        %v575 = vmax.f32 %v573, %v574
        %v576 = vrot.slane %v575, 1
        %v577 = vmax.f32 %v575, %v576
        %v578 = vsel %vm542, %v529, -inf
        %v579 = vrot.slane %v578, 4
        %v580 = vmax.f32 %v578, %v579
        %v581 = vrot.slane %v580, 2
        %v582 = vmax.f32 %v580, %v581
        %v583 = vrot.slane %v582, 1
        %v584 = vmax.f32 %v582, %v583
        %v585 = vsel %vm542, %v534, -inf
        %v586 = vrot.slane %v585, 4
        %v587 = vmax.f32 %v585, %v586
        %v588 = vrot.slane %v587, 2
        %v589 = vmax.f32 %v587, %v588
        %v590 = vrot.slane %v589, 1
        %v591 = vmax.f32 %v589, %v590
        %v592 = vsel %vm542, %v539, -inf
        %v593 = vrot.slane %v592, 4
        %v594 = vmax.f32 %v592, %v593
        %v595 = vrot.slane %v594, 2
        %v596 = vmax.f32 %v594, %v595
        %v597 = vrot.slane %v596, 1
        %v598 = vmax.f32 %v596, %v597
        %v599 = vsub.f32 %v504, %v549
        %v600 = vsub.f32 %v509, %v556
        %v601 = vsub.f32 %v514, %v563
        %v602 = vsub.f32 %v519, %v570
        %v603 = vsub.f32 %v524, %v577
        %v604 = vsub.f32 %v529, %v584
        %v605 = vsub.f32 %v534, %v591
        %v606 = vsub.f32 %v539, %v598
        %v607 = vsel %vm542, %v599, -inf
        %608 = vmax.xlane.f32.xlu0 %v607
        %v609 = vpop.xlane.xlu0 %608
        %v610 = vsel %vm542, %v600, -inf
        %611 = vmax.xlane.f32.xlu0 %v610
        %v612 = vpop.xlane.xlu0 %611
        %v613 = vsel %vm542, %v601, -inf
        %614 = vmax.xlane.f32.xlu0 %v613
        %v615 = vpop.xlane.xlu0 %614
        %v616 = vsel %vm542, %v602, -inf
        %617 = vmax.xlane.f32.xlu0 %v616
        %v618 = vpop.xlane.xlu0 %617
        %v619 = vsel %vm542, %v603, -inf
        %620 = vmax.xlane.f32.xlu0 %v619
        %v621 = vpop.xlane.xlu0 %620
        %v622 = vsel %vm542, %v604, -inf
        %623 = vmax.xlane.f32.xlu0 %v622
        %v624 = vpop.xlane.xlu0 %623
        %v625 = vsel %vm542, %v605, -inf
        %626 = vmax.xlane.f32.xlu0 %v625
        %v627 = vpop.xlane.xlu0 %626
        %v628 = vsel %vm542, %v606, -inf
        %629 = vmax.xlane.f32.xlu0 %v628
        %v630 = vpop.xlane.xlu0 %629
        %v631 = vsub.f32 %v599, %v609
        %v632 = vsub.f32 %v600, %v612
        %v633 = vsub.f32 %v601, %v615
        %v634 = vsub.f32 %v602, %v618
        %v635 = vsub.f32 %v603, %v621
        %v636 = vsub.f32 %v604, %v624
        %v637 = vsub.f32 %v605, %v627
        %v638 = vsub.f32 %v606, %v630
        %v639 = vmul.f32 %v631, 1.442695
        %v640 = vpow.pop %v639
        %v641 = vmul.f32 %v632, 1.442695
        %v642 = vpow.pop %v641
        %v643 = vmul.f32 %v633, 1.442695
        %v644 = vpow.pop %v643
        %v645 = vmul.f32 %v634, 1.442695
        %v646 = vpow.pop %v645
        %v647 = vmul.f32 %v635, 1.442695
        %v648 = vpow.pop %v647
        %v649 = vmul.f32 %v636, 1.442695
        %v650 = vpow.pop %v649
        %v651 = vmul.f32 %v637, 1.442695
        %v652 = vpow.pop %v651
        %v653 = vmul.f32 %v638, 1.442695
        %v654 = vpow.pop %v653
        %v655 = vsel %vm542, %v640, 0.0
        %656 = vadd.xlane.f32.xlu0 %v655
        %v657 = vpop.xlane.xlu0 %656
        %v658 = vsel %vm542, %v642, 0.0
        %659 = vadd.xlane.f32.xlu0 %v658
        %v660 = vpop.xlane.xlu0 %659
        %v661 = vsel %vm542, %v644, 0.0
        %662 = vadd.xlane.f32.xlu0 %v661
        %v663 = vpop.xlane.xlu0 %662
        %v664 = vsel %vm542, %v646, 0.0
        %665 = vadd.xlane.f32.xlu0 %v664
        %v666 = vpop.xlane.xlu0 %665
        %v667 = vsel %vm542, %v648, 0.0
        %668 = vadd.xlane.f32.xlu0 %v667
        %v669 = vpop.xlane.xlu0 %668
        %v670 = vsel %vm542, %v650, 0.0
        %671 = vadd.xlane.f32.xlu0 %v670
        %v672 = vpop.xlane.xlu0 %671
        %v673 = vsel %vm542, %v652, 0.0
        %674 = vadd.xlane.f32.xlu0 %v673
        %v675 = vpop.xlane.xlu0 %674
        %v676 = vsel %vm542, %v654, 0.0
        %677 = vadd.xlane.f32.xlu0 %v676
        %v678 = vpop.xlane.xlu0 %677
        %v679 = vrcp.pop %v657
        %v680 = vrcp.pop %v660
        %v681 = vrcp.pop %v663
        %v682 = vrcp.pop %v666
        %v683 = vrcp.pop %v669
        %v684 = vrcp.pop %v672
        %v685 = vrcp.pop %v675
        %v686 = vrcp.pop %v678
        %v687 = vmul.f32 %v640, %v679
        %v688 = vmul.f32 %v642, %v680
        %v689 = vmul.f32 %v644, %v681
        %v690 = vmul.f32 %v646, %v682
        %v691 = vmul.f32 %v648, %v683
        %v692 = vmul.f32 %v650, %v684
        %v693 = vmul.f32 %v652, %v685
        %v694 = vmul.f32 %v654, %v686
        %v695 = vld [vmem:[%s4] sm:$0xff]
        %v696 = vld [vmem:[%s4 + $0x8] sm:$0xff]
        %v698 = vsel %vm542, %v687, 0
        %v701 = vsel %vm542, %v688, 0
        %v704 = vsel %vm542, %v689, 0
        %v707 = vsel %vm542, %v690, 0
        %v710 = vsel %vm542, %v691, 0
        %v713 = vsel %vm542, %v692, 0
        %v716 = vsel %vm542, %v693, 0
        %v719 = vsel %vm542, %v694, 0
        %721 = vmatprep.subr.mxu0 %v696
        %722 = vmatpush1.msra.mxu0 %v695
        %723 = vmatprep.subr.mxu0 0.0
        %724 = vmatpush1.msra.mxu0 0.0
        %725 = vmatprep.subr.mxu0 0.0
        %726 = vmatpush1.msra.mxu0 0.0
        %727 = vmatprep.subr.mxu0 0.0
        %728 = vmatpush1.msra.mxu0 0.0
        %729 = vmatprep.subr.mxu0 0.0
        %730 = vmatpush1.msra.mxu0 0.0
        %731 = vmatprep.subr.mxu0 0.0
        %732 = vmatpush1.msra.mxu0 0.0
        %733 = vmatprep.subr.mxu0 0.0
        %734 = vmatpush1.msra.mxu0 0.0
        %735 = vmatprep.subr.mxu0 0.0
        %736 = vmatpush1.msra.mxu0 0.0
        %737 = vmatprep.subr.mxu0 0.0
        %738 = vmatpush1.msra.mxu0 0.0
        %739 = vmatprep.subr.mxu0 0.0
        %740 = vmatpush1.msra.mxu0 0.0
        %741 = vmatprep.subr.mxu0 0.0
        %742 = vmatpush1.msra.mxu0 0.0
        %743 = vmatprep.subr.mxu0 0.0
        %744 = vmatpush1.msra.mxu0 0.0
        %745 = vmatprep.subr.mxu0 0.0
        %746 = vmatpush1.msra.mxu0 0.0
        %747 = vmatprep.subr.mxu0 0.0
        %748 = vmatpush1.msra.mxu0 0.0
        %749 = vmatprep.subr.mxu0 0.0
        %750 = vmatpush1.msra.mxu0 0.0
        %751 = vmatprep.subr.mxu0 0.0
        %752 = vmatpush1.msra.mxu0 0.0
        %753 = vmatprep.subr.mxu0 0.0
        %754 = vmatpush1.msra.mxu0 0.0
        %755 = vmatprep.subr.mxu0 0.0
        %756 = vmatpush1.msra.mxu0 0.0
        %757 = vmatprep.subr.mxu0 0.0
        %758 = vmatpush1.msra.mxu0 0.0
        %759 = vmatprep.subr.mxu0 0.0
        %760 = vmatpush1.msra.mxu0 0.0
        %761 = vmatprep.subr.mxu0 0.0
        %762 = vmatpush1.msra.mxu0 0.0
        %763 = vmatprep.subr.mxu0 0.0
        %764 = vmatpush1.msra.mxu0 0.0
        %765 = vmatprep.subr.mxu0 0.0
        %766 = vmatpush1.msra.mxu0 0.0
        %767 = vmatprep.subr.mxu0 0.0
        %768 = vmatpush1.msra.mxu0 0.0
        %769 = vmatprep.subr.mxu0 0.0
        %770 = vmatpush1.msra.mxu0 0.0
        %771 = vmatprep.subr.mxu0 0.0
        %772 = vmatpush1.msra.mxu0 0.0
        %773 = vmatprep.subr.mxu0 0.0
        %774 = vmatpush1.msra.mxu0 0.0
        %775 = vmatprep.subr.mxu0 0.0
        %776 = vmatpush1.msra.mxu0 0.0
        %777 = vmatprep.subr.mxu0 0.0
        %778 = vmatpush1.msra.mxu0 0.0
        %779 = vmatprep.subr.mxu0 0.0
        %780 = vmatpush1.msra.mxu0 0.0
        %781 = vmatprep.subr.mxu0 0.0
        %782 = vmatpush1.msra.mxu0 0.0
        %783 = vmatprep.subr.mxu0 0.0
        %784 = vmatpush1.msra.mxu0 0.0
        %785 = vmatprep.mubr.f32.mxu0 0.0
        %786 = vmatmul.mubr.f32.gmra.mrb[0].mxu0 %v698
        %v787 = vpop.f32.mrb[0].mxu0
        %v788 = vadd.f32 0.0, %v787
        %v789 = vpop.f32.mrb[0].mxu0
        %v790 = vadd.f32 0.0, %v789
        %791 = vmatprep.mubr.f32.mxu0 0.0
        %792 = vmatmul.mubr.f32.gmra.mrb[0].mxu0 %v701
        %v793 = vpop.f32.mrb[0].mxu0
        %v794 = vadd.f32 0.0, %v793
        %v795 = vpop.f32.mrb[0].mxu0
        %v796 = vadd.f32 0.0, %v795
        %797 = vmatprep.mubr.f32.mxu0 0.0
        %798 = vmatmul.mubr.f32.gmra.mrb[0].mxu0 %v704
        %v799 = vpop.f32.mrb[0].mxu0
        %v800 = vadd.f32 0.0, %v799
        %v801 = vpop.f32.mrb[0].mxu0
        %v802 = vadd.f32 0.0, %v801
        %803 = vmatprep.mubr.f32.mxu0 0.0
        %804 = vmatmul.mubr.f32.gmra.mrb[0].mxu0 %v707
        %v805 = vpop.f32.mrb[0].mxu0
        %v806 = vadd.f32 0.0, %v805
        %v807 = vpop.f32.mrb[0].mxu0
        %v808 = vadd.f32 0.0, %v807
        %809 = vmatprep.mubr.f32.mxu0 0.0
        %810 = vmatmul.mubr.f32.gmra.mrb[0].mxu0 %v710
        %v811 = vpop.f32.mrb[0].mxu0
        %v812 = vadd.f32 0.0, %v811
        %v813 = vpop.f32.mrb[0].mxu0
        %v814 = vadd.f32 0.0, %v813
        %815 = vmatprep.mubr.f32.mxu0 0.0
        %816 = vmatmul.mubr.f32.gmra.mrb[0].mxu0 %v713
        %v817 = vpop.f32.mrb[0].mxu0
        %v818 = vadd.f32 0.0, %v817
        %v819 = vpop.f32.mrb[0].mxu0
        %v820 = vadd.f32 0.0, %v819
        %821 = vmatprep.mubr.f32.mxu0 0.0
        %822 = vmatmul.mubr.f32.gmra.mrb[0].mxu0 %v716
        %v823 = vpop.f32.mrb[0].mxu0
        %v824 = vadd.f32 0.0, %v823
        %v825 = vpop.f32.mrb[0].mxu0
        %v826 = vadd.f32 0.0, %v825
        %827 = vmatprep.mubr.f32.mxu0 0.0
        %828 = vmatmul.mubr.f32.gmra.mrb[0].mxu0 %v719
        %v829 = vpop.f32.mrb[0].mxu0
        %v830 = vadd.f32 0.0, %v829
        %v831 = vpop.f32.mrb[0].mxu0
        %v832 = vadd.f32 0.0, %v831
        %833 = vdwg.mxu0
        %v834 = vld [vmem:[%s5] sm:$0xff]
        %v835 = vld [vmem:[%s5 + $0x8] sm:$0xff]
        %v836 = vld [vmem:[%s5 + $0x10] sm:$0xff]
        %v837 = vld [vmem:[%s5 + $0x18] sm:$0xff]
        %v838 = vld [vmem:[%s5 + $0x20] sm:$0xff]
        %v839 = vld [vmem:[%s5 + $0x28] sm:$0xff]
        %v840 = vld [vmem:[%s5 + $0x30] sm:$0xff]
        %v841 = vld [vmem:[%s5 + $0x38] sm:$0xff]
        %842 = vmatprep.subr.mxu0 %v835
        %843 = vmatpush1.msra.mxu0 %v834
        %844 = vmatprep.subr.mxu0 %v837
        %845 = vmatpush1.msra.mxu0 %v836
        %846 = vmatprep.subr.mxu0 %v839
        %847 = vmatpush1.msra.mxu0 %v838
        %848 = vmatprep.subr.mxu0 %v841
        %849 = vmatpush1.msra.mxu0 %v840
        %850 = vmatprep.subr.mxu0 0.0
        %851 = vmatpush1.msra.mxu0 0.0
        %852 = vmatprep.subr.mxu0 0.0
        %853 = vmatpush1.msra.mxu0 0.0
        %854 = vmatprep.subr.mxu0 0.0
        %855 = vmatpush1.msra.mxu0 0.0
        %856 = vmatprep.subr.mxu0 0.0
        %857 = vmatpush1.msra.mxu0 0.0
        %858 = vmatprep.subr.mxu0 0.0
        %859 = vmatpush1.msra.mxu0 0.0
        %860 = vmatprep.subr.mxu0 0.0
        %861 = vmatpush1.msra.mxu0 0.0
        %862 = vmatprep.subr.mxu0 0.0
        %863 = vmatpush1.msra.mxu0 0.0
        %864 = vmatprep.subr.mxu0 0.0
        %865 = vmatpush1.msra.mxu0 0.0
        %866 = vmatprep.subr.mxu0 0.0
        %867 = vmatpush1.msra.mxu0 0.0
        %868 = vmatprep.subr.mxu0 0.0
        %869 = vmatpush1.msra.mxu0 0.0
        %870 = vmatprep.subr.mxu0 0.0
        %871 = vmatpush1.msra.mxu0 0.0
        %872 = vmatprep.subr.mxu0 0.0
        %873 = vmatpush1.msra.mxu0 0.0
        %874 = vmatprep.subr.mxu0 0.0
        %875 = vmatpush1.msra.mxu0 0.0
        %876 = vmatprep.subr.mxu0 0.0
        %877 = vmatpush1.msra.mxu0 0.0
        %878 = vmatprep.subr.mxu0 0.0
        %879 = vmatpush1.msra.mxu0 0.0
        %880 = vmatprep.subr.mxu0 0.0
        %881 = vmatpush1.msra.mxu0 0.0
        %882 = vmatprep.subr.mxu0 0.0
        %883 = vmatpush1.msra.mxu0 0.0
        %884 = vmatprep.subr.mxu0 0.0
        %885 = vmatpush1.msra.mxu0 0.0
        %886 = vmatprep.subr.mxu0 0.0
        %887 = vmatpush1.msra.mxu0 0.0
        %888 = vmatprep.subr.mxu0 0.0
        %889 = vmatpush1.msra.mxu0 0.0
        %890 = vmatprep.subr.mxu0 0.0
        %891 = vmatpush1.msra.mxu0 0.0
        %892 = vmatprep.subr.mxu0 0.0
        %893 = vmatpush1.msra.mxu0 0.0
        %894 = vmatprep.subr.mxu0 0.0
        %895 = vmatpush1.msra.mxu0 0.0
        %896 = vmatprep.subr.mxu0 0.0
        %897 = vmatpush1.msra.mxu0 0.0
        %898 = vmatprep.subr.mxu0 0.0
        %899 = vmatpush1.msra.mxu0 0.0
        %900 = vmatprep.subr.mxu0 0.0
        %901 = vmatpush1.msra.mxu0 0.0
        %902 = vmatprep.subr.mxu0 0.0
        %903 = vmatpush1.msra.mxu0 0.0
        %904 = vmatprep.subr.mxu0 0.0
        %905 = vmatpush1.msra.mxu0 0.0
        %906 = vmatprep.mubr.f32.mxu0 0.0
        %907 = vmatmul.mubr.f32.gmra.mrb[0].mxu0 %v273
        %v908 = vpop.f32.mrb[0].mxu0
        %v909 = vadd.f32 0.0, %v908
        %v910 = vpop.f32.mrb[0].mxu0
        %v911 = vadd.f32 0.0, %v910
        %912 = vmatprep.mubr.f32.mxu0 0.0
        %913 = vmatmul.mubr.f32.gmra.mrb[0].mxu0 %v276
        %v914 = vpop.f32.mrb[0].mxu0
        %v915 = vadd.f32 0.0, %v914
        %v916 = vpop.f32.mrb[0].mxu0
        %v917 = vadd.f32 0.0, %v916
        %918 = vmatprep.mubr.f32.mxu0 0.0
        %919 = vmatmul.mubr.f32.gmra.mrb[0].mxu0 %v279
        %v920 = vpop.f32.mrb[0].mxu0
        %v921 = vadd.f32 0.0, %v920
        %v922 = vpop.f32.mrb[0].mxu0
        %v923 = vadd.f32 0.0, %v922
        %924 = vmatprep.mubr.f32.mxu0 0.0
        %925 = vmatmul.mubr.f32.gmra.mrb[0].mxu0 %v282
        %v926 = vpop.f32.mrb[0].mxu0
        %v927 = vadd.f32 0.0, %v926
        %v928 = vpop.f32.mrb[0].mxu0
        %v929 = vadd.f32 0.0, %v928
        %930 = vmatprep.mubr.f32.mxu0 0.0
        %931 = vmatmul.mubr.f32.gmra.mrb[0].mxu0 %v285
        %v932 = vpop.f32.mrb[0].mxu0
        %v933 = vadd.f32 0.0, %v932
        %v934 = vpop.f32.mrb[0].mxu0
        %v935 = vadd.f32 0.0, %v934
        %936 = vmatprep.mubr.f32.mxu0 0.0
        %937 = vmatmul.mubr.f32.gmra.mrb[0].mxu0 %v288
        %v938 = vpop.f32.mrb[0].mxu0
        %v939 = vadd.f32 0.0, %v938
        %v940 = vpop.f32.mrb[0].mxu0
        %v941 = vadd.f32 0.0, %v940
        %942 = vmatprep.mubr.f32.mxu0 0.0
        %943 = vmatmul.mubr.f32.gmra.mrb[0].mxu0 %v291
        %v944 = vpop.f32.mrb[0].mxu0
        %v945 = vadd.f32 0.0, %v944
        %v946 = vpop.f32.mrb[0].mxu0
        %v947 = vadd.f32 0.0, %v946
        %948 = vmatprep.mubr.f32.mxu0 0.0
        %949 = vmatmul.mubr.f32.gmra.mrb[0].mxu0 %v294
        %v950 = vpop.f32.mrb[0].mxu0
        %v951 = vadd.f32 0.0, %v950
        %v952 = vpop.f32.mrb[0].mxu0
        %v953 = vadd.f32 0.0, %v952
        %954 = vdwg.mxu0
        %v955 = vmul.f32 %v788, %v909
        %v956 = vmul.f32 %v790, %v911
        %v957 = vmul.f32 %v794, %v915
        %v958 = vmul.f32 %v796, %v917
        %v959 = vmul.f32 %v800, %v921
        %v960 = vmul.f32 %v802, %v923
        %v961 = vmul.f32 %v806, %v927
        %v962 = vmul.f32 %v808, %v929
        %v963 = vmul.f32 %v812, %v933
        %v964 = vmul.f32 %v814, %v935
        %v965 = vmul.f32 %v818, %v939
        %v966 = vmul.f32 %v820, %v941
        %v967 = vmul.f32 %v824, %v945
        %v968 = vmul.f32 %v826, %v947
        %v969 = vmul.f32 %v830, %v951
        %v970 = vmul.f32 %v832, %v953
        %v971 = vrot.slane %v955, 4
        %v972 = vadd.f32 %v955, %v971
        %v973 = vrot.slane %v972, 2
        %v974 = vadd.f32 %v972, %v973
        %v975 = vrot.slane %v974, 1
        %v976 = vadd.f32 %v974, %v975
        %v977 = vrot.slane %v956, 4
        %v978 = vadd.f32 %v956, %v977
        %v979 = vrot.slane %v978, 2
        %v980 = vadd.f32 %v978, %v979
        %v981 = vrot.slane %v980, 1
        %v982 = vadd.f32 %v980, %v981
        %v983 = vrot.slane %v957, 4
        %v984 = vadd.f32 %v957, %v983
        %v985 = vrot.slane %v984, 2
        %v986 = vadd.f32 %v984, %v985
        %v987 = vrot.slane %v986, 1
        %v988 = vadd.f32 %v986, %v987
        %v989 = vrot.slane %v958, 4
        %v990 = vadd.f32 %v958, %v989
        %v991 = vrot.slane %v990, 2
        %v992 = vadd.f32 %v990, %v991
        %v993 = vrot.slane %v992, 1
        %v994 = vadd.f32 %v992, %v993
        %v995 = vrot.slane %v959, 4
        %v996 = vadd.f32 %v959, %v995
        %v997 = vrot.slane %v996, 2
        %v998 = vadd.f32 %v996, %v997
        %v999 = vrot.slane %v998, 1
        %v1000 = vadd.f32 %v998, %v999
        %v1001 = vrot.slane %v960, 4
        %v1002 = vadd.f32 %v960, %v1001
        %v1003 = vrot.slane %v1002, 2
        %v1004 = vadd.f32 %v1002, %v1003
        %v1005 = vrot.slane %v1004, 1
        %v1006 = vadd.f32 %v1004, %v1005
        %v1007 = vrot.slane %v961, 4
        %v1008 = vadd.f32 %v961, %v1007
        %v1009 = vrot.slane %v1008, 2
        %v1010 = vadd.f32 %v1008, %v1009
        %v1011 = vrot.slane %v1010, 1
        %v1012 = vadd.f32 %v1010, %v1011
        %v1013 = vrot.slane %v962, 4
        %v1014 = vadd.f32 %v962, %v1013
        %v1015 = vrot.slane %v1014, 2
        %v1016 = vadd.f32 %v1014, %v1015
        %v1017 = vrot.slane %v1016, 1
        %v1018 = vadd.f32 %v1016, %v1017
        %v1019 = vrot.slane %v963, 4
        %v1020 = vadd.f32 %v963, %v1019
        %v1021 = vrot.slane %v1020, 2
        %v1022 = vadd.f32 %v1020, %v1021
        %v1023 = vrot.slane %v1022, 1
        %v1024 = vadd.f32 %v1022, %v1023
        %v1025 = vrot.slane %v964, 4
        %v1026 = vadd.f32 %v964, %v1025
        %v1027 = vrot.slane %v1026, 2
        %v1028 = vadd.f32 %v1026, %v1027
        %v1029 = vrot.slane %v1028, 1
        %v1030 = vadd.f32 %v1028, %v1029
        %v1031 = vrot.slane %v965, 4
        %v1032 = vadd.f32 %v965, %v1031
        %v1033 = vrot.slane %v1032, 2
        %v1034 = vadd.f32 %v1032, %v1033
        %v1035 = vrot.slane %v1034, 1
        %v1036 = vadd.f32 %v1034, %v1035
        %v1037 = vrot.slane %v966, 4
        %v1038 = vadd.f32 %v966, %v1037
        %v1039 = vrot.slane %v1038, 2
        %v1040 = vadd.f32 %v1038, %v1039
        %v1041 = vrot.slane %v1040, 1
        %v1042 = vadd.f32 %v1040, %v1041
        %v1043 = vrot.slane %v967, 4
        %v1044 = vadd.f32 %v967, %v1043
        %v1045 = vrot.slane %v1044, 2
        %v1046 = vadd.f32 %v1044, %v1045
        %v1047 = vrot.slane %v1046, 1
        %v1048 = vadd.f32 %v1046, %v1047
        %v1049 = vrot.slane %v968, 4
        %v1050 = vadd.f32 %v968, %v1049
        %v1051 = vrot.slane %v1050, 2
        %v1052 = vadd.f32 %v1050, %v1051
        %v1053 = vrot.slane %v1052, 1
        %v1054 = vadd.f32 %v1052, %v1053
        %v1055 = vrot.slane %v969, 4
        %v1056 = vadd.f32 %v969, %v1055
        %v1057 = vrot.slane %v1056, 2
        %v1058 = vadd.f32 %v1056, %v1057
        %v1059 = vrot.slane %v1058, 1
        %v1060 = vadd.f32 %v1058, %v1059
        %v1061 = vrot.slane %v970, 4
        %v1062 = vadd.f32 %v970, %v1061
        %v1063 = vrot.slane %v1062, 2
        %v1064 = vadd.f32 %v1062, %v1063
        %v1065 = vrot.slane %v1064, 1
        %v1066 = vadd.f32 %v1064, %v1065
        %vm1083 = vcmask 1041409
        %v1084 = vsel %vm1083, %v988, %v976
        %vm1085 = vcmask 1042434
        %v1086 = vsel %vm1085, %v1000, %v1084
        %vm1087 = vcmask 1043459
        %v1088 = vsel %vm1087, %v1012, %v1086
        %vm1089 = vcmask 1044484
        %v1090 = vsel %vm1089, %v1024, %v1088
        %vm1091 = vcmask 1045509
        %v1092 = vsel %vm1091, %v1036, %v1090
        %vm1093 = vcmask 1046534
        %v1094 = vsel %vm1093, %v1048, %v1092
        %vm1095 = vcmask 1047559
        %v1096 = vsel %vm1095, %v1060, %v1094
        %v1097 = vsel %vm1083, %v994, %v982
        %v1098 = vsel %vm1085, %v1006, %v1097
        %v1099 = vsel %vm1087, %v1018, %v1098
        %v1100 = vsel %vm1089, %v1030, %v1099
        %v1101 = vsel %vm1091, %v1042, %v1100
        %v1102 = vsel %vm1093, %v1054, %v1101
        %v1103 = vsel %vm1095, %v1066, %v1102
        %1106 = vst [vmem:[%s245] sm:$0xff] %v1096
        %1107 = vst [vmem:[%s245 + $0x8] sm:$0xff] %v1103
        %s1108 = sand.u32 %s159, 1
        %s1109 = scalar_lea.sflag [#allocation3], %s1108
        %s1110 = sand.u32 %s159, 1
        %s1111 = smul.addr %s1110, 16
        %s1112 = scalar_lea.vmem [#allocation2], %s1111
        // Predicated region
        $region45: #{tpu_custom_call.1} parent=43 // pred_check
          %p1113 = pneg %p169
        $region46: #{tpu_custom_call.1} parent=43 // pred_check_branch
          %1115 = sbr.rel (%p1113) target = $region48
        $region47: #{tpu_custom_call.1} parent=43 // pred_region
          %s1117 = ssub.s32 256, 256
          %1118 = vsyncadd %s1109, %s1117
          %s1119 = smul.addr %s20, 2
          %s1120 = smul.addr %s1119, 128
          %s1121 = scalar_lea.hbm %s6, %s1120
          %s1123 = sshll.u32 %s1112, 4
          %s1124 = int_to_ptr.vmem [resolvable:$true] %s1123
          %1126 = dma.vmem_to_hbm [thread:$0]  %s1124, 256, %s1121, %s1109
        $region48: #{tpu_custom_call.1} parent=43 // pred_fallthru
          _
      $region44: #{tpu_custom_call.1} parent=5 // pred_fallthru
        _
      %p1127 = scmp.le.s32.totalorder 2, %s15
      // Predicated region
      $region49: #{tpu_custom_call.1} parent=5 // pred_check
        %p1128 = pneg %p1127
      $region50: #{tpu_custom_call.1} parent=5 // pred_check_branch
        %1130 = sbr.rel (%p1128) target = $region52
      $region51: #{tpu_custom_call.1} parent=5 // pred_region
        %s1131 = ssub.s32 %s15, 2
        // Predicated region
        $region53: #{tpu_custom_call.1} parent=51 // pred_check
          %p1132 = pneg %p175
        $region54: #{tpu_custom_call.1} parent=51 // pred_check_branch
          %1134 = sbr.rel (%p1132) target = $region56
        $region55: #{tpu_custom_call.1} parent=51 // pred_region
          %s1135 = sand.u32 %s160, 1
          %s1136 = scalar_lea.sflag [#allocation3], %s1135
          %s1137 = sand.u32 %s160, 1
          %s1138 = smul.addr %s1137, 16
          %s1139 = scalar_lea.vmem [#allocation2], %s1138
          %1140 = dma.done %s1136, 256
        $region56: #{tpu_custom_call.1} parent=51 // pred_fallthru
          _
      $region52: #{tpu_custom_call.1} parent=5 // pred_fallthru
        _
    $region6: #{tpu_custom_call.1} parent=1 // loop_footer
      %s19 = sadd.s32 1, %s15
    $region7: #{tpu_custom_call.1} parent=1 // loop_footer_branch
      %14 = sbr.rel target = $region3
    $region8: #{tpu_custom_call.1} parent=1 // loop_exit
      _
    %1141 = vsyncpa [#allocation3], 1
    %s1142 = scalar_lea.sflag [#allocation3], 1
    %1143 = vsyncpa %s1142, 1

</llo_original>
